<compile_context>
chip_gen: v7x
topology: tpu7x:2x2x1
jax: 0.10.0
libtpu: 0.0.40
codegen_flags: <defaults>
</compile_context>

<pallas_src>
import functools
import math

import jax
import jax.numpy as jnp
import numpy as np
from jax.experimental import pallas as pl
from jax.experimental.pallas import tpu as pltpu


def _round_up(x, m):
    return ((x + m - 1) // m) * m


def _pick_tile(dim, candidates):
    """Largest candidate that evenly divides `dim`, else the full (small) dim."""
    for c in candidates:
        if dim % c == 0:
            return c
    return dim


# ----------------------------------------------------------------------------
# Linear projection: y = x @ W^T + b  (tiled, pipelined, MXU, f32 accumulation)
# ----------------------------------------------------------------------------
def _linear_kernel(x_ref, wt_ref, b_ref, o_ref, acc_ref):
    @pl.when(pl.program_id(2) == 0)
    def _init():
        acc_ref[...] = jnp.zeros_like(acc_ref)

    acc_ref[...] += jnp.dot(x_ref[...], wt_ref[...],
                            preferred_element_type=jnp.float32)

    @pl.when(pl.program_id(2) == pl.num_programs(2) - 1)
    def _finalize():
        o_ref[...] = (acc_ref[...] + b_ref[...]).astype(o_ref.dtype)


def _linear_pallas(x2d, wt, b2d, out_dtype):
    """y = x2d @ wt + b2d.  wt is (K, N) pre-transposed & pre-cast; b2d is (1, N) f32."""
    M0, K = x2d.shape
    N = wt.shape[1]
    x2d = x2d.astype(wt.dtype)

    # Pad M to a multiple of 128 for large non-divisible M: keeps stores lane/sublane
    # dense and prevents the full-dim tile fallback from blowing VMEM.
    if M0 > 128 and M0 % 128 != 0:
        M = _round_up(M0, 128)
        x2d = jnp.pad(x2d, ((0, M - M0), (0, 0)))
    else:
        M = M0

    tm = _pick_tile(M, (512, 256, 128))
    tn = _pick_tile(N, (512, 256, 128))
    tk = _pick_tile(K, (512, 256, 128))
    grid = (M // tm, N // tn, K // tk)

    itm = jnp.dtype(wt.dtype).itemsize
    cost = pl.CostEstimate(
        flops=2 * M * N * K,
        transcendentals=0,
        bytes_accessed=(M * K + K * N) * itm
        + M * N * jnp.dtype(out_dtype).itemsize + N * 4)

    out = pl.pallas_call(
        _linear_kernel,
        out_shape=jax.ShapeDtypeStruct((M, N), out_dtype),
        grid=grid,
        in_specs=[
            pl.BlockSpec((tm, tk), lambda i, j, k: (i, k)),
            pl.BlockSpec((tk, tn), lambda i, j, k: (k, j)),
            pl.BlockSpec((1, tn), lambda i, j, k: (0, j)),
        ],
        out_specs=pl.BlockSpec((tm, tn), lambda i, j, k: (i, j)),
        scratch_shapes=[pltpu.VMEM((tm, tn), jnp.float32)],
        compiler_params=pltpu.CompilerParams(
            dimension_semantics=("parallel", "parallel", "arbitrary")),
        cost_estimate=cost,
    )(x2d, wt, b2d)
    return out[:M0] if M != M0 else out


# ----------------------------------------------------------------------------
# Attention: one (batch, head, tgt-tile) per grid step, lane-dense I/O
# ----------------------------------------------------------------------------
def _attn_kernel(q_ref, k_ref, v_ref, mask_ref, o_ref, w_ref,
                 *, clamp_min, clamp_max):
    # Per-step blocks (already sliced to ONE head along the lane dim by BlockSpec):
    #   q (1, tq, hd), k/v (1, src, hd), mask (1, 1, src),
    #   out (1, tq, hd), weights (1, 1, tq, src).
    s = jax.lax.dot_general(
        q_ref[0], k_ref[0],
        dimension_numbers=(((1,), (1,)), ((), ())),      # contract head_dim, no K^T
        preferred_element_type=jnp.float32)               # (tq, src)
    if clamp_min:
        s = jnp.maximum(s, -50000.0)
    if clamp_max:
        s = jnp.minimum(s, 50000.0)
    s = s + mask_ref[0]                                    # (1, src) broadcast, once/step
    m = jnp.max(s, axis=-1, keepdims=True)
    p = jnp.exp(s - m)
    denom = jnp.sum(p, axis=-1, keepdims=True)
    probs = p / denom                                      # exact: weights are returned
    w_ref[0, 0] = probs.astype(w_ref.dtype)
    o_ref[0] = jnp.dot(probs.astype(v_ref.dtype), v_ref[0],
                       preferred_element_type=jnp.float32).astype(o_ref.dtype)


def _attention_pallas(q_e, k_e, v_e, add_mask, num_heads, head_dim,
                      clamp_min, clamp_max, weights_dtype=jnp.float32):
    """q_e: (B, tgt, E); k_e, v_e: (B, src, E); add_mask: (B, 1, src) additive."""
    B, tgt0, E = q_e.shape
    src = k_e.shape[1]
    H, hd = num_heads, head_dim

    # Pad tgt to a multiple of 128 when large & non-divisible (padded query rows are
    # sliced away afterwards; row-wise softmax keeps valid rows exact).
    if tgt0 > 128 and tgt0 % 128 != 0:
        tgt = _round_up(tgt0, 128)
        q_e = jnp.pad(q_e, ((0, 0), (0, tgt - tgt0), (0, 0)))
    else:
        tgt = tgt0

    # Cap tq at 256: the resident (tq, src) probs block stays small enough for
    # v7x's 64 MiB VMEM and v5e's scoped default even at large src.
    tq = _pick_tile(tgt, (256, 128))
    grid = (B, H, tgt // tq)

    kernel = functools.partial(_attn_kernel, clamp_min=clamp_min,
                               clamp_max=clamp_max)

    itm = jnp.dtype(q_e.dtype).itemsize
    witm = jnp.dtype(weights_dtype).itemsize
    cost = pl.CostEstimate(
        flops=4 * B * tgt * src * E,
        transcendentals=B * H * tgt * src,
        bytes_accessed=(2 * B * tgt * E + 2 * B * src * E) * itm
        + B * H * tgt * src * witm + B * src * 4)

    out, w = pl.pallas_call(
        kernel,
        out_shape=(jax.ShapeDtypeStruct((B, tgt, E), q_e.dtype),
                   jax.ShapeDtypeStruct((B, H, tgt, src), weights_dtype)),
        grid=grid,
        in_specs=[
            # Head h is selected by the block index along the lane (embed) dim.
            pl.BlockSpec((1, tq, hd), lambda b, h, t: (b, t, h)),
            pl.BlockSpec((1, src, hd), lambda b, h, t: (b, 0, h)),   # reused across t
            pl.BlockSpec((1, src, hd), lambda b, h, t: (b, 0, h)),   # reused across t
            pl.BlockSpec((1, 1, src), lambda b, h, t: (b, 0, 0)),
        ],
        out_specs=(
            pl.BlockSpec((1, tq, hd), lambda b, h, t: (b, t, h)),
            pl.BlockSpec((1, 1, tq, src), lambda b, h, t: (b, h, t, 0)),
        ),
        compiler_params=pltpu.CompilerParams(
            dimension_semantics=("parallel", "parallel", "parallel"),
            # Headroom for large src on v5e's 16 MiB scoped default; still well
            # under v7x's 64 MiB physical VMEM.
            vmem_limit_bytes=48 * 1024 * 1024),
        cost_estimate=cost,
    )(q_e, k_e, v_e, add_mask)

    if tgt != tgt0:
        out = out[:, :tgt0]
        w = w[:, :, :tgt0]
    return out, w


# ----------------------------------------------------------------------------
# Module wrapper
# ----------------------------------------------------------------------------
class MultiHeadAttentionPallas:
    def __init__(self, q_dim, k_dim, embed_dim, num_heads, dropout=0.1,
                 clamp_min_for_underflow=False, clamp_max_for_overflow=False,
                 key=None, compute_dtype=jnp.float32,
                 attn_weights_dtype=jnp.float32):
        assert embed_dim % num_heads == 0
        self.q_dim, self.k_dim = q_dim, k_dim
        self.embed_dim, self.num_heads = embed_dim, num_heads
        self.head_dim = embed_dim // num_heads
        # The per-head lane-sliced BlockSpecs need head_dim to be a full 128-lane
        # multiple (or a single head spanning the whole embed dim).
        assert self.head_dim % 128 == 0 or num_heads == 1, (
            "head_dim must be a multiple of 128 (lane width) for the per-head "
            "BlockSpec layout")
        # TODO(synk): head_dim < 128 with multiple heads would need packing two
        # heads per 128-lane tile; not implemented.
        self.scale = self.head_dim ** (-0.5)
        self.dropout = dropout
        # TODO(synk): dropout is a no-op (eval-mode semantics), matching PyTorch eval().
        self.clamp_min = clamp_min_for_underflow
        self.clamp_max = clamp_max_for_overflow
        # Set compute_dtype=jnp.bfloat16 on v6e/v7x for ~2x MXU throughput and half
        # the HBM/VMEM operand bytes (f32 accumulation is kept either way).
        self.compute_dtype = compute_dtype
        # attn_weights_dtype=jnp.bfloat16 halves the dominant probs writeback stream.
        self.attn_weights_dtype = attn_weights_dtype

        key = jax.random.PRNGKey(0) if key is None else key
        ks = jax.random.split(key, 4)

        def xavier(k, out_f, in_f):
            bound = math.sqrt(6.0 / (in_f + out_f))
            return jax.random.uniform(k, (out_f, in_f), jnp.float32, -bound, bound)

        # f32 masters (used by the pure-JAX reference).
        self.q_w = xavier(ks[0], embed_dim, q_dim)
        self.q_b = jnp.zeros((embed_dim,), jnp.float32)
        self.k_w = xavier(ks[1], embed_dim, k_dim)
        self.k_b = jnp.zeros((embed_dim,), jnp.float32)
        self.v_w = xavier(ks[2], embed_dim, k_dim)
        self.v_b = jnp.zeros((embed_dim,), jnp.float32)
        self.o_w = xavier(ks[3], q_dim, embed_dim)
        self.o_b = jnp.zeros((q_dim,), jnp.float32)

        cd = compute_dtype
        # Pre-transpose + pre-cast once (weights are static); 1/sqrt(head_dim) is
        # folded into the Q projection so the attention kernel never rescales Q.
        self._q_wt_scaled = (self.q_w * self.scale).T.astype(cd)
        self._q_b2d_scaled = (self.q_b * self.scale).reshape(1, -1).astype(jnp.float32)
        self._k_wt = self.k_w.T.astype(cd)
        self._k_b2d = self.k_b.reshape(1, -1).astype(jnp.float32)
        self._v_wt = self.v_w.T.astype(cd)
        self._v_b2d = self.v_b.reshape(1, -1).astype(jnp.float32)
        self._o_wt = self.o_w.T.astype(cd)
        self._o_b2d = self.o_b.reshape(1, -1).astype(jnp.float32)

    def __call__(self, q, k, v, attention_mask=None):
        bsz, tgt_len, _ = q.shape
        src_len = k.shape[1]
        cd = self.compute_dtype

        # Projections (tiled Pallas matmuls), emitted directly in compute_dtype.
        q_p = _linear_pallas(q.reshape(bsz * tgt_len, self.q_dim),
                             self._q_wt_scaled, self._q_b2d_scaled, cd)
        k_p = _linear_pallas(k.reshape(bsz * src_len, self.k_dim),
                             self._k_wt, self._k_b2d, cd)
        v_p = _linear_pallas(v.reshape(bsz * src_len, self.k_dim),
                             self._v_wt, self._v_b2d, cd)

        # Lane-dense (batch, seq, embed) layout goes straight into the attention
        # kernel -- heads are sliced per grid step by the BlockSpecs, no HBM
        # split-heads / merge-heads transposes.
        q_e = q_p.reshape(bsz, tgt_len, self.embed_dim)
        k_e = k_p.reshape(bsz, src_len, self.embed_dim)
        v_e = v_p.reshape(bsz, src_len, self.embed_dim)

        # Additive mask replicating torch semantics:
        #   masked_fill(mask == 0, -9e15); nonzero mask values are ADDED as-is.
        if attention_mask is None:
            add_mask = jnp.zeros((bsz, 1, src_len), jnp.float32)
        else:
            am = attention_mask.astype(jnp.float32)
            add_mask = jnp.where(am == 0, jnp.float32(-9e15), am).reshape(
                bsz, 1, src_len)

        attn_out, attn_w = _attention_pallas(
            q_e, k_e, v_e, add_mask, self.num_heads, self.head_dim,
            self.clamp_min, self.clamp_max, self.attn_weights_dtype)

        # attn_out is already (bsz, tgt, embed) with heads merged -- no transpose.
        out = _linear_pallas(attn_out.reshape(bsz * tgt_len, self.embed_dim),
                             self._o_wt, self._o_b2d, jnp.float32).reshape(
                                 bsz, tgt_len, self.q_dim)
        attn_weights = attn_w.reshape(bsz * self.num_heads, tgt_len, src_len)
        return out, attn_weights


# ----------------------------------------------------------------------------
# Pure-JAX reference (mirrors the PyTorch forward) for correctness check
# ----------------------------------------------------------------------------
def _reference(m, q, k, v, attention_mask):
    hp = jax.lax.Precision.HIGHEST
    bsz, tgt_len, _ = q.shape
    src_len = k.shape[1]
    qs = (jnp.dot(q, m.q_w.T, precision=hp) + m.q_b) * m.scale
    ks = jnp.dot(k, m.k_w.T, precision=hp) + m.k_b
    vs = jnp.dot(v, m.v_w.T, precision=hp) + m.v_b

    def split(x, seq):
        return jnp.transpose(x.reshape(bsz, seq, m.num_heads, m.head_dim),
                             (0, 2, 1, 3)).reshape(bsz * m.num_heads, seq, m.head_dim)

    qs, ks, vs = split(qs, tgt_len), split(ks, src_len), split(vs, src_len)
    w = jnp.einsum("bqd,bkd->bqk", qs, ks, precision=hp)
    if m.clamp_min:
        w = jnp.maximum(w, -50000.0)
    if m.clamp_max:
        w = jnp.minimum(w, 50000.0)
    if attention_mask is not None:
        am = attention_mask.astype(jnp.float32)
        add = jnp.where(am == 0, jnp.float32(-9e15), am)[:, None, None, :]
        w = (w.reshape(bsz, m.num_heads, tgt_len, src_len) + add).reshape(
            bsz * m.num_heads, tgt_len, src_len)
    w = jax.nn.softmax(w, axis=-1)
    o = jnp.einsum("bqk,bkd->bqd", w, vs, precision=hp)
    o = jnp.transpose(o.reshape(bsz, m.num_heads, tgt_len, m.head_dim),
                      (0, 2, 1, 3)).reshape(bsz, tgt_len, m.embed_dim)
    return jnp.dot(o, m.o_w.T, precision=hp) + m.o_b, w


if __name__ == "__main__":
    # Small but lane-friendly shapes: head_dim = 128 (MXU/lane native).
    bsz, tgt_len, src_len = 2, 8, 16
    q_dim, k_dim, embed_dim, num_heads = 64, 48, 256, 2

    root = jax.random.PRNGKey(0)
    k_q, k_k, k_v, k_p = jax.random.split(root, 4)
    q = jax.random.normal(k_q, (bsz, tgt_len, q_dim), jnp.float32)
    k = jax.random.normal(k_k, (bsz, src_len, k_dim), jnp.float32)
    v = jax.random.normal(k_v, (bsz, src_len, k_dim), jnp.float32)
    # 2-D attention mask (bsz, src_len): 1 = keep (value gets added!), 0 = masked.
    mask = jnp.ones((bsz, src_len), jnp.float32).at[:, -3:].set(0.0)

    mha = MultiHeadAttentionPallas(q_dim, k_dim, embed_dim, num_heads,
                                   clamp_min_for_underflow=True,
                                   clamp_max_for_overflow=True, key=k_p)

    out, attn = mha(q, k, v, attention_mask=mask)
    out = jax.block_until_ready(out)
    attn = jax.block_until_ready(attn)

    ref_out, ref_attn = _reference(mha, q, k, v, mask)
    # Softmax normalization is exact now; tolerances only cover MXU-vs-XLA f32
    # matmul accumulation differences.
    np.testing.assert_allclose(np.asarray(attn), np.asarray(ref_attn),
                               atol=1e-3, rtol=1e-3)
    np.testing.assert_allclose(np.asarray(out), np.asarray(ref_out),
                               atol=2e-3, rtol=2e-3)

    print("KERNEL_OK")
</pallas_src>

<mosaic_0001>
module attributes {stable_mosaic.version = 11 : i64} {
  func.func @_linear_kernel(%arg0: i32, %arg1: i32, %arg2: i32, %arg3: memref<16x64xf32, #tpu.memory_space<vmem>>, %arg4: memref<64x256xf32, #tpu.memory_space<vmem>>, %arg5: memref<1x256xf32, #tpu.memory_space<vmem>>, %arg6: memref<16x256xf32, #tpu.memory_space<vmem>>, %arg7: memref<16x256xf32, #tpu.memory_space<vmem>>) attributes {dimension_semantics = [#tpu.dimension_semantics<parallel>, #tpu.dimension_semantics<parallel>, #tpu.dimension_semantics<arbitrary>], iteration_bounds = array<i64: 1, 1, 1>, scalar_prefetch = 0 : i64, scratch_operands = 1 : i64, tpu.core_type = #tpu.core_type<tc>, window_params = [{transform_indices = @transform_0, window_bounds = array<i64: 16, 64>}, {transform_indices = @transform_1, window_bounds = array<i64: 64, 256>}, {transform_indices = @transform_2, window_bounds = array<i64: 1, 256>}, {transform_indices = @transform_3, window_bounds = array<i64: 16, 256>}]} {
    %c0_i32 = arith.constant 0 : i32
    %0 = arith.cmpi eq, %arg2, %c0_i32 : i32
    %1 = arith.extui %0 : i1 to i32
    %c0_i32_0 = arith.constant 0 : i32
    %2 = arith.cmpi ne, %1, %c0_i32_0 : i32
    scf.if %2 {
      %cst_10 = arith.constant 0.000000e+00 : f32
      %12 = vector.broadcast %cst_10 : f32 to vector<16x256xf32>
      %c0_11 = arith.constant 0 : index
      %c0_12 = arith.constant 0 : index
      %13 = vector.load %arg7[%c0_11, %c0_12] : memref<16x256xf32, #tpu.memory_space<vmem>>, vector<16x256xf32>
      tpu.vector_store %arg7[%c0_11, %c0_12], %12 {strides = array<i32>} : memref<16x256xf32, #tpu.memory_space<vmem>>, vector<16x256xf32>,
    } else {
    }
    %c0 = arith.constant 0 : index
    %c0_1 = arith.constant 0 : index
    %3 = vector.load %arg7[%c0, %c0_1] : memref<16x256xf32, #tpu.memory_space<vmem>>, vector<16x256xf32>
    %c0_2 = arith.constant 0 : index
    %c0_3 = arith.constant 0 : index
    %4 = vector.load %arg3[%c0_2, %c0_3] : memref<16x64xf32, #tpu.memory_space<vmem>>, vector<16x64xf32>
    %c0_4 = arith.constant 0 : index
    %c0_5 = arith.constant 0 : index
    %5 = vector.load %arg4[%c0_4, %c0_5] : memref<64x256xf32, #tpu.memory_space<vmem>>, vector<64x256xf32>
    %cst = arith.constant dense<0.000000e+00> : vector<16x256xf32>
    %6 = tpu.matmul %4, %5, %cst {dimension_numbers = #tpu.dot_dimension_numbers<[1], [0], [0], [1], [0, 0, 1, 1], [], []>} : vector<16x64xf32>, vector<64x256xf32>, vector<16x256xf32> -> vector<16x256xf32>
    %7 = arith.addf %3, %6 : vector<16x256xf32>
    %c0_6 = arith.constant 0 : index
    %c0_7 = arith.constant 0 : index
    %8 = vector.load %arg7[%c0_6, %c0_7] : memref<16x256xf32, #tpu.memory_space<vmem>>, vector<16x256xf32>
    tpu.vector_store %arg7[%c0_6, %c0_7], %7 {strides = array<i32>} : memref<16x256xf32, #tpu.memory_space<vmem>>, vector<16x256xf32>,
    %c0_i32_8 = arith.constant 0 : i32
    %9 = arith.cmpi eq, %arg2, %c0_i32_8 : i32
    %10 = arith.extui %9 : i1 to i32
    %c0_i32_9 = arith.constant 0 : i32
    %11 = arith.cmpi ne, %10, %c0_i32_9 : i32
    scf.if %11 {
      %c0_10 = arith.constant 0 : index
      %c0_11 = arith.constant 0 : index
      %12 = vector.load %arg7[%c0_10, %c0_11] : memref<16x256xf32, #tpu.memory_space<vmem>>, vector<16x256xf32>
      %c0_12 = arith.constant 0 : index
      %c0_13 = arith.constant 0 : index
      %13 = vector.load %arg5[%c0_12, %c0_13] : memref<1x256xf32, #tpu.memory_space<vmem>>, vector<1x256xf32>
      %14 = vector.broadcast %13 : vector<1x256xf32> to vector<16x256xf32>
      %15 = arith.addf %12, %14 : vector<16x256xf32>
      %c0_14 = arith.constant 0 : index
      %c0_15 = arith.constant 0 : index
      %16 = vector.load %arg6[%c0_14, %c0_15] : memref<16x256xf32, #tpu.memory_space<vmem>>, vector<16x256xf32>
      tpu.vector_store %arg6[%c0_14, %c0_15], %15 {strides = array<i32>} : memref<16x256xf32, #tpu.memory_space<vmem>>, vector<16x256xf32>,
    } else {
    }
    return
  }
  func.func @transform_0(%arg0: i32, %arg1: i32, %arg2: i32) -> (i32, i32) {
    %c0_i32 = arith.constant 0 : i32
    return %arg0, %arg2 : i32, i32
  }
  func.func @transform_1(%arg0: i32, %arg1: i32, %arg2: i32) -> (i32, i32) {
    %c0_i32 = arith.constant 0 : i32
    return %arg2, %arg1 : i32, i32
  }
  func.func @transform_2(%arg0: i32, %arg1: i32, %arg2: i32) -> (i32, i32) {
    %c0_i32 = arith.constant 0 : i32
    %c0_i32_0 = arith.constant 0 : i32
    return %c0_i32, %arg1 : i32, i32
  }
  func.func @transform_3(%arg0: i32, %arg1: i32, %arg2: i32) -> (i32, i32) {
    %c0_i32 = arith.constant 0 : i32
    return %arg0, %arg1 : i32, i32
  }
}

</mosaic_0001>

<llo_original>
// kernel: tpu_custom_call.1
$region0: #{tpu_custom_call.1}
  #allocation0 [shape = 'u32[]', space=smem, size = 0x4, offset = 0x4, fixed_abs, tag = 'smem constant byte address 0x4 - core index']
  #allocation1 [shape = 'u32[144,128]{1,0:T(1,128)}', space=vmem, size = 0x12000, scoped, tag = 'internal scratch']
  #allocation2 [shape = 'f32[16,256]{1,0:T(8,128)}', space=vmem, size = 0x4000, scoped, tag = 'scratch operand']
  %s0 = inlined_call_operand.hbm [shape: f32[16,64], index: 0, kind: input, shape index: {}]
  %s1 = inlined_call_operand.hbm [shape: f32[64,256], index: 1, kind: input, shape index: {}]
  %s2 = inlined_call_operand.vmem [shape: f32[1,256], index: 2, kind: input, shape index: {}]
  %s3 = inlined_call_operand.hbm [shape: f32[16,256], index: 3, kind: output, shape index: {}]
  %s4 = sld [smem:[#allocation0]]
  $region38: #{tpu_custom_call.1} parent=0
    _
  %s6 = ssub.s32 1, %s4
  %s7 = scalar_select 0, %s6, %s4
  $region1: #{tpu_custom_call.1} parent=0
    #allocation3 [shape = 'u8[8192]{0}', space=vmem, size = 0x2000, scoped, tag = 'input window, operand 0, single buffered']
    #allocation4 [shape = 's32[1]{0}', space=sflag, size = 0x4, scoped, tag = 'scoped memory for tpu_custom_call.1']
    #allocation5 [shape = 's32[1]{0}', space=sflag, size = 0x4, scoped, tag = 'scoped memory for tpu_custom_call.1']
    #allocation6 [shape = 'u8[65536]{0}', space=vmem, size = 0x10000, scoped, tag = 'input window, operand 1, single buffered']
    #allocation7 [shape = 's32[1]{0}', space=sflag, size = 0x4, scoped, tag = 'scoped memory for tpu_custom_call.1']
    #allocation8 [shape = 'u8[16384]{0}', space=vmem, size = 0x4000, scoped, tag = 'output window, operand 0, single buffered']
    %8 = vsyncpa [#allocation4], 0
    %9 = vsyncpa [#allocation7], 0
    %10 = vsyncpa [#allocation5], 0
    // Predicated region
    $region2: #{tpu_custom_call.1} parent=1 // pred_check
      _
    $region3: #{tpu_custom_call.1} parent=1 // pred_check_branch
      %12 = sbr.rel (0) target = $region5
    $region4: #{tpu_custom_call.1} parent=1 // pred_region
      %s14 = ssub.s32 256, 256
      %15 = vsyncadd [#allocation4], %s14
      %s16 = sshll.u32 [#allocation3], 4
      %s17 = int_to_ptr.vmem [resolvable:$true] %s16
      %22 = dma.hbm_to_vmem [thread:$0]  %s0, 256, %s17, [#allocation4], 128, 128, 8
    $region5: #{tpu_custom_call.1} parent=1 // pred_fallthru
      _
    // Predicated region
    $region6: #{tpu_custom_call.1} parent=1 // pred_check
      _
    $region7: #{tpu_custom_call.1} parent=1 // pred_check_branch
      %24 = sbr.rel (0) target = $region9
    $region8: #{tpu_custom_call.1} parent=1 // pred_region
      %s26 = ssub.s32 2048, 2048
      %27 = vsyncadd [#allocation7], %s26
      %s28 = sshll.u32 [#allocation6], 4
      %s29 = int_to_ptr.vmem [resolvable:$true] %s28
      %34 = dma.hbm_to_vmem [thread:$0]  %s1, 2048, %s29, [#allocation7], 256, 256, 16
    $region9: #{tpu_custom_call.1} parent=1 // pred_fallthru
      _
    // Predicated region
    $region10: #{tpu_custom_call.1} parent=1 // pred_check
      _
    $region11: #{tpu_custom_call.1} parent=1 // pred_check_branch
      %36 = sbr.rel (0) target = $region13
    $region12: #{tpu_custom_call.1} parent=1 // pred_region
      _
    $region13: #{tpu_custom_call.1} parent=1 // pred_fallthru
      _
    // Predicated region
    $region14: #{tpu_custom_call.1} parent=1 // pred_check
      _
    $region15: #{tpu_custom_call.1} parent=1 // pred_check_branch
      %38 = sbr.rel (0) target = $region17
    $region16: #{tpu_custom_call.1} parent=1 // pred_region
      %39 = dma.done [#allocation4], 256
    $region17: #{tpu_custom_call.1} parent=1 // pred_fallthru
      _
    // Predicated region
    $region18: #{tpu_custom_call.1} parent=1 // pred_check
      _
    $region19: #{tpu_custom_call.1} parent=1 // pred_check_branch
      %41 = sbr.rel (0) target = $region21
    $region20: #{tpu_custom_call.1} parent=1 // pred_region
      %42 = dma.done [#allocation7], 2048
    $region21: #{tpu_custom_call.1} parent=1 // pred_fallthru
      _
    %p43 = scmp.eq.s32.totalorder 0, 0
    // Predicated region
    $region22: #{tpu_custom_call.1} parent=1 // pred_check
      %p44 = pneg %p43
    $region23: #{tpu_custom_call.1} parent=1 // pred_check_branch
      %46 = sbr.rel (%p44) target = $region25
    $region24: #{tpu_custom_call.1} parent=1 // pred_region
      %47 = vst [vmem:[#allocation2] sm:$0xff] 0.0
      %48 = vst [vmem:[#allocation2 + $0x8] sm:$0xff] 0.0
      %49 = vst [vmem:[#allocation2 + $0x10] sm:$0xff] 0.0
      %50 = vst [vmem:[#allocation2 + $0x18] sm:$0xff] 0.0
    $region25: #{tpu_custom_call.1} parent=1 // pred_fallthru
      _
    %v51 = vld [vmem:[#allocation2] sm:$0xff]
    %v52 = vld [vmem:[#allocation2 + $0x8] sm:$0xff]
    %v53 = vld [vmem:[#allocation2 + $0x10] sm:$0xff]
    %v54 = vld [vmem:[#allocation2 + $0x18] sm:$0xff]
    %v55 = vld [vmem:[#allocation3] sm:$0xff]
    %v56 = vld [vmem:[#allocation3 + $0x8] sm:$0xff]
    %v57 = vld [vmem:[#allocation6] sm:$0xff]
    %v58 = vld [vmem:[#allocation6 + $0x8] sm:$0xff]
    %v59 = vld [vmem:[#allocation6 + $0x10] sm:$0xff]
    %v60 = vld [vmem:[#allocation6 + $0x18] sm:$0xff]
    %v61 = vld [vmem:[#allocation6 + $0x20] sm:$0xff]
    %v62 = vld [vmem:[#allocation6 + $0x28] sm:$0xff]
    %v63 = vld [vmem:[#allocation6 + $0x30] sm:$0xff]
    %v64 = vld [vmem:[#allocation6 + $0x38] sm:$0xff]
    %v65 = vld [vmem:[#allocation6 + $0x40] sm:$0xff]
    %v66 = vld [vmem:[#allocation6 + $0x48] sm:$0xff]
    %v67 = vld [vmem:[#allocation6 + $0x50] sm:$0xff]
    %v68 = vld [vmem:[#allocation6 + $0x58] sm:$0xff]
    %v69 = vld [vmem:[#allocation6 + $0x60] sm:$0xff]
    %v70 = vld [vmem:[#allocation6 + $0x68] sm:$0xff]
    %v71 = vld [vmem:[#allocation6 + $0x70] sm:$0xff]
    %v72 = vld [vmem:[#allocation6 + $0x78] sm:$0xff]
    %vm73 = vcmask 523264
    %v75 = vsel %vm73, %v55, 0
    %v78 = vsel %vm73, %v56, 0
    %80 = vmatprep.subr.mxu0 %v58
    %81 = vmatpush1.msra.mxu0 %v57
    %82 = vmatprep.subr.mxu0 %v60
    %83 = vmatpush1.msra.mxu0 %v59
    %84 = vmatprep.subr.mxu0 %v62
    %85 = vmatpush1.msra.mxu0 %v61
    %86 = vmatprep.subr.mxu0 %v64
    %87 = vmatpush1.msra.mxu0 %v63
    %88 = vmatprep.subr.mxu0 %v66
    %89 = vmatpush1.msra.mxu0 %v65
    %90 = vmatprep.subr.mxu0 %v68
    %91 = vmatpush1.msra.mxu0 %v67
    %92 = vmatprep.subr.mxu0 %v70
    %93 = vmatpush1.msra.mxu0 %v69
    %94 = vmatprep.subr.mxu0 %v72
    %95 = vmatpush1.msra.mxu0 %v71
    %96 = vmatprep.subr.mxu0 0.0
    %97 = vmatpush1.msra.mxu0 0.0
    %98 = vmatprep.subr.mxu0 0.0
    %99 = vmatpush1.msra.mxu0 0.0
    %100 = vmatprep.subr.mxu0 0.0
    %101 = vmatpush1.msra.mxu0 0.0
    %102 = vmatprep.subr.mxu0 0.0
    %103 = vmatpush1.msra.mxu0 0.0
    %104 = vmatprep.subr.mxu0 0.0
    %105 = vmatpush1.msra.mxu0 0.0
    %106 = vmatprep.subr.mxu0 0.0
    %107 = vmatpush1.msra.mxu0 0.0
    %108 = vmatprep.subr.mxu0 0.0
    %109 = vmatpush1.msra.mxu0 0.0
    %110 = vmatprep.subr.mxu0 0.0
    %111 = vmatpush1.msra.mxu0 0.0
    %112 = vmatprep.subr.mxu0 0.0
    %113 = vmatpush1.msra.mxu0 0.0
    %114 = vmatprep.subr.mxu0 0.0
    %115 = vmatpush1.msra.mxu0 0.0
    %116 = vmatprep.subr.mxu0 0.0
    %117 = vmatpush1.msra.mxu0 0.0
    %118 = vmatprep.subr.mxu0 0.0
    %119 = vmatpush1.msra.mxu0 0.0
    %120 = vmatprep.subr.mxu0 0.0
    %121 = vmatpush1.msra.mxu0 0.0
    %122 = vmatprep.subr.mxu0 0.0
    %123 = vmatpush1.msra.mxu0 0.0
    %124 = vmatprep.subr.mxu0 0.0
    %125 = vmatpush1.msra.mxu0 0.0
    %126 = vmatprep.subr.mxu0 0.0
    %127 = vmatpush1.msra.mxu0 0.0
    %128 = vmatprep.subr.mxu0 0.0
    %129 = vmatpush1.msra.mxu0 0.0
    %130 = vmatprep.subr.mxu0 0.0
    %131 = vmatpush1.msra.mxu0 0.0
    %132 = vmatprep.subr.mxu0 0.0
    %133 = vmatpush1.msra.mxu0 0.0
    %134 = vmatprep.subr.mxu0 0.0
    %135 = vmatpush1.msra.mxu0 0.0
    %136 = vmatprep.subr.mxu0 0.0
    %137 = vmatpush1.msra.mxu0 0.0
    %138 = vmatprep.subr.mxu0 0.0
    %139 = vmatpush1.msra.mxu0 0.0
    %140 = vmatprep.subr.mxu0 0.0
    %141 = vmatpush1.msra.mxu0 0.0
    %142 = vmatprep.subr.mxu0 0.0
    %143 = vmatpush1.msra.mxu0 0.0
    %144 = vmatprep.mubr.f32.mxu0 0.0
    %145 = vmatmul.mubr.f32.gmra.mrb[0].mxu0 %v75
    %v146 = vpop.f32.mrb[0].mxu0
    %v147 = vadd.f32 0.0, %v146
    %v148 = vpop.f32.mrb[0].mxu0
    %v149 = vadd.f32 0.0, %v148
    %150 = vmatprep.mubr.f32.mxu0 0.0
    %151 = vmatmul.mubr.f32.gmra.mrb[0].mxu0 %v78
    %v152 = vpop.f32.mrb[0].mxu0
    %v153 = vadd.f32 0.0, %v152
    %v154 = vpop.f32.mrb[0].mxu0
    %v155 = vadd.f32 0.0, %v154
    %156 = vdwg.mxu0
    %v157 = vadd.f32 %v51, %v147
    %v158 = vadd.f32 %v52, %v149
    %v159 = vadd.f32 %v53, %v153
    %v160 = vadd.f32 %v54, %v155
    %161 = vst [vmem:[#allocation2] sm:$0xff] %v157
    %162 = vst [vmem:[#allocation2 + $0x8] sm:$0xff] %v158
    %163 = vst [vmem:[#allocation2 + $0x10] sm:$0xff] %v159
    %164 = vst [vmem:[#allocation2 + $0x18] sm:$0xff] %v160
    // Predicated region
    $region26: #{tpu_custom_call.1} parent=1 // pred_check
      %p165 = pneg %p43
    $region27: #{tpu_custom_call.1} parent=1 // pred_check_branch
      %167 = sbr.rel (%p165) target = $region29
    $region28: #{tpu_custom_call.1} parent=1 // pred_region
      %v168 = vld [vmem:[#allocation2] sm:$0xff]
      %v169 = vld [vmem:[#allocation2 + $0x8] sm:$0xff]
      %v170 = vld [vmem:[#allocation2 + $0x10] sm:$0xff]
      %v171 = vld [vmem:[#allocation2 + $0x18] sm:$0xff]
      %v172 = vld [vmem:[%s2] sm:$0x3]
      %v174 = vlaneseq
      %v175 = vshrl.u32 %v174, 7
      %v176 = vsub.s32 0, %v175
      %v177 = vrot.slane %v172, %v176
      %v178 = vlaneseq
      %v179 = vshrl.u32 %v178, 7
      %v180 = vsub.s32 1, %v179
      %v181 = vrot.slane %v172, %v180
      %v184 = vadd.f32 %v168, %v177
      %v185 = vadd.f32 %v169, %v181
      %v186 = vadd.f32 %v170, %v177
      %v187 = vadd.f32 %v171, %v181
      %188 = vst [vmem:[#allocation8] sm:$0xff] %v184
      %189 = vst [vmem:[#allocation8 + $0x8] sm:$0xff] %v185
      %190 = vst [vmem:[#allocation8 + $0x10] sm:$0xff] %v186
      %191 = vst [vmem:[#allocation8 + $0x18] sm:$0xff] %v187
    $region29: #{tpu_custom_call.1} parent=1 // pred_fallthru
      _
    // Predicated region
    $region30: #{tpu_custom_call.1} parent=1 // pred_check
      _
    $region31: #{tpu_custom_call.1} parent=1 // pred_check_branch
      %193 = sbr.rel (0) target = $region33
    $region32: #{tpu_custom_call.1} parent=1 // pred_region
      %s195 = ssub.s32 512, 512
      %196 = vsyncadd [#allocation5], %s195
      %s197 = sshll.u32 [#allocation8], 4
      %s198 = int_to_ptr.vmem [resolvable:$true] %s197
      %203 = dma.vmem_to_hbm [thread:$0]  %s198, 512, %s3, [#allocation5], 256, 256, 16
    $region33: #{tpu_custom_call.1} parent=1 // pred_fallthru
      _
    // Predicated region
    $region34: #{tpu_custom_call.1} parent=1 // pred_check
      _
    $region35: #{tpu_custom_call.1} parent=1 // pred_check_branch
      %205 = sbr.rel (0) target = $region37
    $region36: #{tpu_custom_call.1} parent=1 // pred_region
      %206 = dma.done [#allocation5], 512
    $region37: #{tpu_custom_call.1} parent=1 // pred_fallthru
      _
    %207 = vsyncpa [#allocation4], 1
    %208 = vsyncpa [#allocation7], 1
    %209 = vsyncpa [#allocation5], 1

</llo_original>
